<compile_context>
chip_gen: v6e
topology: v6e:2x2x1
jax: 0.10.0
libtpu: 0.0.40
codegen_flags: <defaults>
</compile_context>

<pallas_src>
import functools

import jax
import jax.numpy as jnp
from jax.experimental import pallas as pl
from jax.experimental.pallas import tpu as pltpu


def _round_up(n, m):
    return ((n + m - 1) // m) * m


def _mlp_kernel(x_ref, w1_ref, b1_ref, w2_ref, b2_ref, o_ref):
    # x:  (TM, Dp)   w1: (Dp, Hp)   b1: (1, Hp)
    # h:  (TM, Hp)   w2: (Hp, Op)   b2: (1, Op)   o: (TM, Op)
    h = jnp.dot(x_ref[...], w1_ref[...], preferred_element_type=jnp.float32)
    h = jnp.maximum(h + b1_ref[...], 0.0)            # bias + ReLU 1 (f32 epilogue)
    h = h.astype(w2_ref.dtype)                        # back to MXU input dtype
    y = jnp.dot(h, w2_ref[...], preferred_element_type=jnp.float32)
    y = jnp.maximum(y + b2_ref[...], 0.0)             # bias + ReLU 2 (f32 epilogue)
    o_ref[...] = y.astype(o_ref.dtype)


@functools.partial(jax.jit, static_argnames=("compute_dtype", "block_rows"))
def cv_model_forward(x_nchw, w1, b1, w2, b2, *,
                     compute_dtype=jnp.float32, block_rows=None):
    """Flatten -> Linear -> ReLU -> Linear -> ReLU, fused in one Pallas kernel.

    compute_dtype: dtype of MXU inputs (x, w1, w2).  Use jnp.bfloat16 on
                   v5e/v6e/v7x to halve weight traffic; accumulation and the
                   bias/ReLU epilogue stay in f32 either way.
    """
    B = x_nchw.shape[0]
    x = x_nchw.reshape(B, -1)                        # nn.Flatten() (NCHW contiguous)
    D = x.shape[1]
    H = w1.shape[1]
    O = w2.shape[1]

    # ---- lane/sublane-dense padded shapes --------------------------------
    Dp = _round_up(D, 128)
    Hp = _round_up(H, 128)
    Op = _round_up(O, 128)

    # Batch tile: full (padded) batch for small B, 256-row tiles for large B.
    TM = block_rows if block_rows is not None else min(256, _round_up(B, 8))
    Bp = _round_up(B, TM)
    n_tiles = Bp // TM

    in_dt = jnp.dtype(compute_dtype)

    # Zero-pad everything once on the host side; zeros are harmless through
    # matmul / bias(0) / ReLU and the padded rows/cols get sliced off below.
    xp = jnp.zeros((Bp, Dp), in_dt).at[:B, :D].set(x.astype(in_dt))
    w1p = jnp.zeros((Dp, Hp), in_dt).at[:D, :H].set(w1.astype(in_dt))
    w2p = jnp.zeros((Hp, Op), in_dt).at[:H, :O].set(w2.astype(in_dt))
    b1p = jnp.zeros((1, Hp), jnp.float32).at[0, :H].set(b1.astype(jnp.float32))
    b2p = jnp.zeros((1, Op), jnp.float32).at[0, :O].set(b2.astype(jnp.float32))

    # ---- VMEM budget (right-sized, v7x-safe) -----------------------------
    isz = in_dt.itemsize
    vmem_bytes = (
        2 * TM * Dp * isz            # x tile, double-buffered
        + 2 * TM * Op * 4            # out tile (f32), double-buffered
        + 2 * Dp * Hp * isz          # resident w1 (allow 2 buffers)
        + 2 * Hp * Op * isz          # resident w2
        + 2 * 8 * Hp * 4             # b1 tile (padded to 8 sublanes)
        + 2 * 8 * Op * 4             # b2 tile
    )
    vmem_limit = int(min(48 * 1024 * 1024, max(2 * vmem_bytes, 4 * 1024 * 1024)))

    # ---- cost estimate so XLA can overlap neighbors ----------------------
    cost = pl.CostEstimate(
        flops=2 * Bp * Dp * Hp + 2 * Bp * Hp * Op,
        transcendentals=0,
        bytes_accessed=(Bp * Dp * isz + Dp * Hp * isz + Hp * Op * isz
                        + Hp * 4 + Op * 4 + Bp * Op * 4),
    )

    out = pl.pallas_call(
        _mlp_kernel,
        out_shape=jax.ShapeDtypeStruct((Bp, Op), jnp.float32),
        grid=(n_tiles,),
        in_specs=[
            pl.BlockSpec((TM, Dp), lambda i: (i, 0)),   # x: streamed per tile
            pl.BlockSpec((Dp, Hp), lambda i: (0, 0)),   # w1: resident
            pl.BlockSpec((1, Hp), lambda i: (0, 0)),    # b1: resident
            pl.BlockSpec((Hp, Op), lambda i: (0, 0)),   # w2: resident
            pl.BlockSpec((1, Op), lambda i: (0, 0)),    # b2: resident
        ],
        out_specs=pl.BlockSpec((TM, Op), lambda i: (i, 0)),
        compiler_params=pltpu.CompilerParams(
            dimension_semantics=("parallel",),          # shard tiles over TCs (v7x)
            vmem_limit_bytes=vmem_limit,
        ),
        cost_estimate=cost,
    )(xp, w1p, b1p, w2p, b2p)

    return out[:B, :O]


def init_params(key, in_features, hidden_features, out_features):
    """Deterministic init mimicking PyTorch nn.Linear default (U[-1/sqrt(fan_in), ...])."""
    k1, k2, k3, k4 = jax.random.split(key, 4)
    bound1 = 1.0 / jnp.sqrt(in_features)
    bound2 = 1.0 / jnp.sqrt(hidden_features)
    w1 = jax.random.uniform(k1, (in_features, hidden_features), jnp.float32,
                            -bound1, bound1)
    b1 = jax.random.uniform(k2, (hidden_features,), jnp.float32, -bound1, bound1)
    w2 = jax.random.uniform(k3, (hidden_features, out_features), jnp.float32,
                            -bound2, bound2)
    b2 = jax.random.uniform(k4, (out_features,), jnp.float32, -bound2, bound2)
    return w1, b1, w2, b2


if __name__ == "__main__":
    # Small shapes consistent with the module: NCHW image input, flattened.
    B, C, Hs, Ws = 2, 4, 16, 16          # x: [2, 4, 16, 16]
    in_features = C * Hs * Ws            # 1024
    hidden_features = 32
    out_features = 10

    key = jax.random.PRNGKey(0)
    kx, kp = jax.random.split(key)
    x = jax.random.normal(kx, (B, C, Hs, Ws), dtype=jnp.float32)
    w1, b1, w2, b2 = init_params(kp, in_features, hidden_features, out_features)

    # f32 path (exact vs reference). For throughput on v5e/v6e/v7x, pass
    # compute_dtype=jnp.bfloat16 and loosen the tolerance.
    y = cv_model_forward(x, w1, b1, w2, b2)
    jax.block_until_ready(y)

    # Sanity check against pure-JAX reference.
    x_flat = x.reshape(B, -1)
    ref = jnp.maximum(jnp.maximum(x_flat @ w1 + b1, 0.0) @ w2 + b2, 0.0)
    assert y.shape == (B, out_features)
    assert jnp.allclose(y, ref, atol=1e-5, rtol=1e-5)

    print("KERNEL_OK")
</pallas_src>

<mosaic_0001>
module attributes {stable_mosaic.version = 11 : i64} {
  func.func @_mlp_kernel(%arg0: i32, %arg1: memref<8x1024xf32, #tpu.memory_space<vmem>>, %arg2: memref<1024x128xf32, #tpu.memory_space<vmem>>, %arg3: memref<1x128xf32, #tpu.memory_space<vmem>>, %arg4: memref<128x128xf32, #tpu.memory_space<vmem>>, %arg5: memref<1x128xf32, #tpu.memory_space<vmem>>, %arg6: memref<8x128xf32, #tpu.memory_space<vmem>>) attributes {dimension_semantics = [#tpu.dimension_semantics<parallel>], iteration_bounds = array<i64: 1>, scalar_prefetch = 0 : i64, scratch_operands = 0 : i64, tpu.core_type = #tpu.core_type<tc>, window_params = [{transform_indices = @transform_0, window_bounds = array<i64: 8, 1024>}, {pipeline_mode = #tpu.pipeline_mode<synchronous>, transform_indices = @transform_1, window_bounds = array<i64: 1024, 128>}, {pipeline_mode = #tpu.pipeline_mode<synchronous>, transform_indices = @transform_2, window_bounds = array<i64: 1, 128>}, {pipeline_mode = #tpu.pipeline_mode<synchronous>, transform_indices = @transform_3, window_bounds = array<i64: 128, 128>}, {pipeline_mode = #tpu.pipeline_mode<synchronous>, transform_indices = @transform_4, window_bounds = array<i64: 1, 128>}, {transform_indices = @transform_5, window_bounds = array<i64: 8, 128>}]} {
    %c0 = arith.constant 0 : index
    %c0_0 = arith.constant 0 : index
    %0 = vector.load %arg1[%c0, %c0_0] : memref<8x1024xf32, #tpu.memory_space<vmem>>, vector<8x1024xf32>
    %c0_1 = arith.constant 0 : index
    %c0_2 = arith.constant 0 : index
    %1 = vector.load %arg2[%c0_1, %c0_2] : memref<1024x128xf32, #tpu.memory_space<vmem>>, vector<1024x128xf32>
    %cst = arith.constant dense<0.000000e+00> : vector<8x128xf32>
    %2 = tpu.matmul %0, %1, %cst {dimension_numbers = #tpu.dot_dimension_numbers<[1], [0], [0], [1], [0, 0, 1, 1], [], []>} : vector<8x1024xf32>, vector<1024x128xf32>, vector<8x128xf32> -> vector<8x128xf32>
    %c0_3 = arith.constant 0 : index
    %c0_4 = arith.constant 0 : index
    %3 = vector.load %arg3[%c0_3, %c0_4] : memref<1x128xf32, #tpu.memory_space<vmem>>, vector<1x128xf32>
    %4 = vector.broadcast %3 : vector<1x128xf32> to vector<8x128xf32>
    %5 = arith.addf %2, %4 : vector<8x128xf32>
    %cst_5 = arith.constant 0.000000e+00 : f32
    %6 = vector.broadcast %cst_5 : f32 to vector<8x128xf32>
    %7 = arith.maximumf %5, %6 : vector<8x128xf32>
    %c0_6 = arith.constant 0 : index
    %c0_7 = arith.constant 0 : index
    %8 = vector.load %arg4[%c0_6, %c0_7] : memref<128x128xf32, #tpu.memory_space<vmem>>, vector<128x128xf32>
    %cst_8 = arith.constant dense<0.000000e+00> : vector<8x128xf32>
    %9 = tpu.matmul %7, %8, %cst_8 {dimension_numbers = #tpu.dot_dimension_numbers<[1], [0], [0], [1], [0, 0, 1, 1], [], []>} : vector<8x128xf32>, vector<128x128xf32>, vector<8x128xf32> -> vector<8x128xf32>
    %c0_9 = arith.constant 0 : index
    %c0_10 = arith.constant 0 : index
    %10 = vector.load %arg5[%c0_9, %c0_10] : memref<1x128xf32, #tpu.memory_space<vmem>>, vector<1x128xf32>
    %11 = vector.broadcast %10 : vector<1x128xf32> to vector<8x128xf32>
    %12 = arith.addf %9, %11 : vector<8x128xf32>
    %cst_11 = arith.constant 0.000000e+00 : f32
    %13 = vector.broadcast %cst_11 : f32 to vector<8x128xf32>
    %14 = arith.maximumf %12, %13 : vector<8x128xf32>
    %c0_12 = arith.constant 0 : index
    %c0_13 = arith.constant 0 : index
    %15 = vector.load %arg6[%c0_12, %c0_13] : memref<8x128xf32, #tpu.memory_space<vmem>>, vector<8x128xf32>
    tpu.vector_store %arg6[%c0_12, %c0_13], %14 {strides = array<i32>} : memref<8x128xf32, #tpu.memory_space<vmem>>, vector<8x128xf32>,
    return
  }
  func.func @transform_0(%arg0: i32) -> (i32, i32) {
    %c0_i32 = arith.constant 0 : i32
    %c0_i32_0 = arith.constant 0 : i32
    return %arg0, %c0_i32 : i32, i32
  }
  func.func @transform_1(%arg0: i32) -> (i32, i32) {
    %c0_i32 = arith.constant 0 : i32
    %c0_i32_0 = arith.constant 0 : i32
    %c0_i32_1 = arith.constant 0 : i32
    return %c0_i32, %c0_i32_0 : i32, i32
  }
  func.func @transform_2(%arg0: i32) -> (i32, i32) {
    %c0_i32 = arith.constant 0 : i32
    %c0_i32_0 = arith.constant 0 : i32
    %c0_i32_1 = arith.constant 0 : i32
    return %c0_i32, %c0_i32_0 : i32, i32
  }
  func.func @transform_3(%arg0: i32) -> (i32, i32) {
    %c0_i32 = arith.constant 0 : i32
    %c0_i32_0 = arith.constant 0 : i32
    %c0_i32_1 = arith.constant 0 : i32
    return %c0_i32, %c0_i32_0 : i32, i32
  }
  func.func @transform_4(%arg0: i32) -> (i32, i32) {
    %c0_i32 = arith.constant 0 : i32
    %c0_i32_0 = arith.constant 0 : i32
    %c0_i32_1 = arith.constant 0 : i32
    return %c0_i32, %c0_i32_0 : i32, i32
  }
  func.func @transform_5(%arg0: i32) -> (i32, i32) {
    %c0_i32 = arith.constant 0 : i32
    %c0_i32_0 = arith.constant 0 : i32
    return %arg0, %c0_i32 : i32, i32
  }
}

</mosaic_0001>

<llo_original>
// kernel: cv_model_forward.1
$region0: #{cv_model_forward.1}
  #allocation0 [shape = 'u32[]', space=smem, size = 0x4, offset = 0x4, fixed_abs, tag = 'smem constant byte address 0x4 - core index']
  #allocation1 [shape = 'u32[144,128]{1,0:T(1,128)}', space=vmem, size = 0x12000, scoped, tag = 'internal scratch']
  %s0 = inlined_call_operand.vmem [shape: f32[8,1024], index: 0, kind: input, shape index: {}]
  %s1 = inlined_call_operand.vmem [shape: f32[1024,128], index: 1, kind: input, shape index: {}]
  %s2 = inlined_call_operand.vmem [shape: f32[1,128], index: 2, kind: input, shape index: {}]
  %s3 = inlined_call_operand.vmem [shape: f32[128,128], index: 3, kind: input, shape index: {}]
  %s4 = inlined_call_operand.vmem [shape: f32[1,128], index: 4, kind: input, shape index: {}]
  %s5 = inlined_call_operand.vmem [shape: f32[8,128], index: 5, kind: output, shape index: {}]
  %s6 = sld [smem:[#allocation0]]
  $region30: #{cv_model_forward.1} parent=0
    _
  %s8 = ssub.s32 1, %s6
  %s9 = scalar_select 0, %s8, %s6
  // Predicated region
  $region2: #{cv_model_forward.1} parent=0 // pred_check
    _
  $region3: #{cv_model_forward.1} parent=0 // pred_check_branch
    %11 = sbr.rel (0) target = $region5
  $region4: #{cv_model_forward.1} parent=0 // pred_region
    _
  $region5: #{cv_model_forward.1} parent=0 // pred_fallthru
    _
  // Predicated region
  $region6: #{cv_model_forward.1} parent=0 // pred_check
    _
  $region7: #{cv_model_forward.1} parent=0 // pred_check_branch
    %13 = sbr.rel (0) target = $region9
  $region8: #{cv_model_forward.1} parent=0 // pred_region
    _
  $region9: #{cv_model_forward.1} parent=0 // pred_fallthru
    _
  // Predicated region
  $region10: #{cv_model_forward.1} parent=0 // pred_check
    _
  $region11: #{cv_model_forward.1} parent=0 // pred_check_branch
    %15 = sbr.rel (0) target = $region13
  $region12: #{cv_model_forward.1} parent=0 // pred_region
    _
  $region13: #{cv_model_forward.1} parent=0 // pred_fallthru
    _
  // Predicated region
  $region14: #{cv_model_forward.1} parent=0 // pred_check
    _
  $region15: #{cv_model_forward.1} parent=0 // pred_check_branch
    %17 = sbr.rel (0) target = $region17
  $region16: #{cv_model_forward.1} parent=0 // pred_region
    _
  $region17: #{cv_model_forward.1} parent=0 // pred_fallthru
    _
  // Predicated region
  $region18: #{cv_model_forward.1} parent=0 // pred_check
    _
  $region19: #{cv_model_forward.1} parent=0 // pred_check_branch
    %19 = sbr.rel (0) target = $region21
  $region20: #{cv_model_forward.1} parent=0 // pred_region
    _
  $region21: #{cv_model_forward.1} parent=0 // pred_fallthru
    _
  %v20 = vld [vmem:[%s0] sm:$0xff]
  %v21 = vld [vmem:[%s0 + $0x8] sm:$0xff]
  %v22 = vld [vmem:[%s0 + $0x10] sm:$0xff]
  %v23 = vld [vmem:[%s0 + $0x18] sm:$0xff]
  %v24 = vld [vmem:[%s0 + $0x20] sm:$0xff]
  %v25 = vld [vmem:[%s0 + $0x28] sm:$0xff]
  %v26 = vld [vmem:[%s0 + $0x30] sm:$0xff]
  %v27 = vld [vmem:[%s0 + $0x38] sm:$0xff]
  %v28 = vld [vmem:[%s1] sm:$0xff]
  %v29 = vld [vmem:[%s1 + $0x8] sm:$0xff]
  %v30 = vld [vmem:[%s1 + $0x10] sm:$0xff]
  %v31 = vld [vmem:[%s1 + $0x18] sm:$0xff]
  %v32 = vld [vmem:[%s1 + $0x20] sm:$0xff]
  %v33 = vld [vmem:[%s1 + $0x28] sm:$0xff]
  %v34 = vld [vmem:[%s1 + $0x30] sm:$0xff]
  %v35 = vld [vmem:[%s1 + $0x38] sm:$0xff]
  %v36 = vld [vmem:[%s1 + $0x40] sm:$0xff]
  %v37 = vld [vmem:[%s1 + $0x48] sm:$0xff]
  %v38 = vld [vmem:[%s1 + $0x50] sm:$0xff]
  %v39 = vld [vmem:[%s1 + $0x58] sm:$0xff]
  %v40 = vld [vmem:[%s1 + $0x60] sm:$0xff]
  %v41 = vld [vmem:[%s1 + $0x68] sm:$0xff]
  %v42 = vld [vmem:[%s1 + $0x70] sm:$0xff]
  %v43 = vld [vmem:[%s1 + $0x78] sm:$0xff]
  %v44 = vld [vmem:[%s1 + $0x80] sm:$0xff]
  %v45 = vld [vmem:[%s1 + $0x88] sm:$0xff]
  %v46 = vld [vmem:[%s1 + $0x90] sm:$0xff]
  %v47 = vld [vmem:[%s1 + $0x98] sm:$0xff]
  %v48 = vld [vmem:[%s1 + $0xa0] sm:$0xff]
  %v49 = vld [vmem:[%s1 + $0xa8] sm:$0xff]
  %v50 = vld [vmem:[%s1 + $0xb0] sm:$0xff]
  %v51 = vld [vmem:[%s1 + $0xb8] sm:$0xff]
  %v52 = vld [vmem:[%s1 + $0xc0] sm:$0xff]
  %v53 = vld [vmem:[%s1 + $0xc8] sm:$0xff]
  %v54 = vld [vmem:[%s1 + $0xd0] sm:$0xff]
  %v55 = vld [vmem:[%s1 + $0xd8] sm:$0xff]
  %v56 = vld [vmem:[%s1 + $0xe0] sm:$0xff]
  %v57 = vld [vmem:[%s1 + $0xe8] sm:$0xff]
  %v58 = vld [vmem:[%s1 + $0xf0] sm:$0xff]
  %v59 = vld [vmem:[%s1 + $0xf8] sm:$0xff]
  %v60 = vld [vmem:[%s1 + $0x100] sm:$0xff]
  %v61 = vld [vmem:[%s1 + $0x108] sm:$0xff]
  %v62 = vld [vmem:[%s1 + $0x110] sm:$0xff]
  %v63 = vld [vmem:[%s1 + $0x118] sm:$0xff]
  %v64 = vld [vmem:[%s1 + $0x120] sm:$0xff]
  %v65 = vld [vmem:[%s1 + $0x128] sm:$0xff]
  %v66 = vld [vmem:[%s1 + $0x130] sm:$0xff]
  %v67 = vld [vmem:[%s1 + $0x138] sm:$0xff]
  %v68 = vld [vmem:[%s1 + $0x140] sm:$0xff]
  %v69 = vld [vmem:[%s1 + $0x148] sm:$0xff]
  %v70 = vld [vmem:[%s1 + $0x150] sm:$0xff]
  %v71 = vld [vmem:[%s1 + $0x158] sm:$0xff]
  %v72 = vld [vmem:[%s1 + $0x160] sm:$0xff]
  %v73 = vld [vmem:[%s1 + $0x168] sm:$0xff]
  %v74 = vld [vmem:[%s1 + $0x170] sm:$0xff]
  %v75 = vld [vmem:[%s1 + $0x178] sm:$0xff]
  %v76 = vld [vmem:[%s1 + $0x180] sm:$0xff]
  %v77 = vld [vmem:[%s1 + $0x188] sm:$0xff]
  %v78 = vld [vmem:[%s1 + $0x190] sm:$0xff]
  %v79 = vld [vmem:[%s1 + $0x198] sm:$0xff]
  %v80 = vld [vmem:[%s1 + $0x1a0] sm:$0xff]
  %v81 = vld [vmem:[%s1 + $0x1a8] sm:$0xff]
  %v82 = vld [vmem:[%s1 + $0x1b0] sm:$0xff]
  %v83 = vld [vmem:[%s1 + $0x1b8] sm:$0xff]
  %v84 = vld [vmem:[%s1 + $0x1c0] sm:$0xff]
  %v85 = vld [vmem:[%s1 + $0x1c8] sm:$0xff]
  %v86 = vld [vmem:[%s1 + $0x1d0] sm:$0xff]
  %v87 = vld [vmem:[%s1 + $0x1d8] sm:$0xff]
  %v88 = vld [vmem:[%s1 + $0x1e0] sm:$0xff]
  %v89 = vld [vmem:[%s1 + $0x1e8] sm:$0xff]
  %v90 = vld [vmem:[%s1 + $0x1f0] sm:$0xff]
  %v91 = vld [vmem:[%s1 + $0x1f8] sm:$0xff]
  %v92 = vld [vmem:[%s1 + $0x200] sm:$0xff]
  %v93 = vld [vmem:[%s1 + $0x208] sm:$0xff]
  %v94 = vld [vmem:[%s1 + $0x210] sm:$0xff]
  %v95 = vld [vmem:[%s1 + $0x218] sm:$0xff]
  %v96 = vld [vmem:[%s1 + $0x220] sm:$0xff]
  %v97 = vld [vmem:[%s1 + $0x228] sm:$0xff]
  %v98 = vld [vmem:[%s1 + $0x230] sm:$0xff]
  %v99 = vld [vmem:[%s1 + $0x238] sm:$0xff]
  %v100 = vld [vmem:[%s1 + $0x240] sm:$0xff]
  %v101 = vld [vmem:[%s1 + $0x248] sm:$0xff]
  %v102 = vld [vmem:[%s1 + $0x250] sm:$0xff]
  %v103 = vld [vmem:[%s1 + $0x258] sm:$0xff]
  %v104 = vld [vmem:[%s1 + $0x260] sm:$0xff]
  %v105 = vld [vmem:[%s1 + $0x268] sm:$0xff]
  %v106 = vld [vmem:[%s1 + $0x270] sm:$0xff]
  %v107 = vld [vmem:[%s1 + $0x278] sm:$0xff]
  %v108 = vld [vmem:[%s1 + $0x280] sm:$0xff]
  %v109 = vld [vmem:[%s1 + $0x288] sm:$0xff]
  %v110 = vld [vmem:[%s1 + $0x290] sm:$0xff]
  %v111 = vld [vmem:[%s1 + $0x298] sm:$0xff]
  %v112 = vld [vmem:[%s1 + $0x2a0] sm:$0xff]
  %v113 = vld [vmem:[%s1 + $0x2a8] sm:$0xff]
  %v114 = vld [vmem:[%s1 + $0x2b0] sm:$0xff]
  %v115 = vld [vmem:[%s1 + $0x2b8] sm:$0xff]
  %v116 = vld [vmem:[%s1 + $0x2c0] sm:$0xff]
  %v117 = vld [vmem:[%s1 + $0x2c8] sm:$0xff]
  %v118 = vld [vmem:[%s1 + $0x2d0] sm:$0xff]
  %v119 = vld [vmem:[%s1 + $0x2d8] sm:$0xff]
  %v120 = vld [vmem:[%s1 + $0x2e0] sm:$0xff]
  %v121 = vld [vmem:[%s1 + $0x2e8] sm:$0xff]
  %v122 = vld [vmem:[%s1 + $0x2f0] sm:$0xff]
  %v123 = vld [vmem:[%s1 + $0x2f8] sm:$0xff]
  %v124 = vld [vmem:[%s1 + $0x300] sm:$0xff]
  %v125 = vld [vmem:[%s1 + $0x308] sm:$0xff]
  %v126 = vld [vmem:[%s1 + $0x310] sm:$0xff]
  %v127 = vld [vmem:[%s1 + $0x318] sm:$0xff]
  %v128 = vld [vmem:[%s1 + $0x320] sm:$0xff]
  %v129 = vld [vmem:[%s1 + $0x328] sm:$0xff]
  %v130 = vld [vmem:[%s1 + $0x330] sm:$0xff]
  %v131 = vld [vmem:[%s1 + $0x338] sm:$0xff]
  %v132 = vld [vmem:[%s1 + $0x340] sm:$0xff]
  %v133 = vld [vmem:[%s1 + $0x348] sm:$0xff]
  %v134 = vld [vmem:[%s1 + $0x350] sm:$0xff]
  %v135 = vld [vmem:[%s1 + $0x358] sm:$0xff]
  %v136 = vld [vmem:[%s1 + $0x360] sm:$0xff]
  %v137 = vld [vmem:[%s1 + $0x368] sm:$0xff]
  %v138 = vld [vmem:[%s1 + $0x370] sm:$0xff]
  %v139 = vld [vmem:[%s1 + $0x378] sm:$0xff]
  %v140 = vld [vmem:[%s1 + $0x380] sm:$0xff]
  %v141 = vld [vmem:[%s1 + $0x388] sm:$0xff]
  %v142 = vld [vmem:[%s1 + $0x390] sm:$0xff]
  %v143 = vld [vmem:[%s1 + $0x398] sm:$0xff]
  %v144 = vld [vmem:[%s1 + $0x3a0] sm:$0xff]
  %v145 = vld [vmem:[%s1 + $0x3a8] sm:$0xff]
  %v146 = vld [vmem:[%s1 + $0x3b0] sm:$0xff]
  %v147 = vld [vmem:[%s1 + $0x3b8] sm:$0xff]
  %v148 = vld [vmem:[%s1 + $0x3c0] sm:$0xff]
  %v149 = vld [vmem:[%s1 + $0x3c8] sm:$0xff]
  %v150 = vld [vmem:[%s1 + $0x3d0] sm:$0xff]
  %v151 = vld [vmem:[%s1 + $0x3d8] sm:$0xff]
  %v152 = vld [vmem:[%s1 + $0x3e0] sm:$0xff]
  %v153 = vld [vmem:[%s1 + $0x3e8] sm:$0xff]
  %v154 = vld [vmem:[%s1 + $0x3f0] sm:$0xff]
  %v155 = vld [vmem:[%s1 + $0x3f8] sm:$0xff]
  %v156 = vld [vmem:[%s2] sm:$0x1]
  %v158 = vlaneseq
  %v159 = vshrl.u32 %v158, 7
  %v160 = vsub.s32 0, %v159
  %v161 = vrot.slane %v156, %v160
  %163 = vmatprep.subr.mxu0 0.0
  %164 = vmatpush1.msra.mxu0 %v43
  %165 = vmatprep.subr.mxu0 0.0
  %166 = vmatpush1.msra.mxu0 %v42
  %167 = vmatprep.subr.mxu0 0.0
  %168 = vmatpush1.msra.mxu0 %v41
  %169 = vmatprep.subr.mxu0 0.0
  %170 = vmatpush1.msra.mxu0 %v40
  %171 = vmatprep.subr.mxu0 0.0
  %172 = vmatpush1.msra.mxu0 %v39
  %173 = vmatprep.subr.mxu0 0.0
  %174 = vmatpush1.msra.mxu0 %v38
  %175 = vmatprep.subr.mxu0 0.0
  %176 = vmatpush1.msra.mxu0 %v37
  %177 = vmatprep.subr.mxu0 0.0
  %178 = vmatpush1.msra.mxu0 %v36
  %179 = vmatprep.subr.mxu0 0.0
  %180 = vmatpush1.msra.mxu0 %v35
  %181 = vmatprep.subr.mxu0 0.0
  %182 = vmatpush1.msra.mxu0 %v34
  %183 = vmatprep.subr.mxu0 0.0
  %184 = vmatpush1.msra.mxu0 %v33
  %185 = vmatprep.subr.mxu0 0.0
  %186 = vmatpush1.msra.mxu0 %v32
  %187 = vmatprep.subr.mxu0 0.0
  %188 = vmatpush1.msra.mxu0 %v31
  %189 = vmatprep.subr.mxu0 0.0
  %190 = vmatpush1.msra.mxu0 %v30
  %191 = vmatprep.subr.mxu0 0.0
  %192 = vmatpush1.msra.mxu0 %v29
  %193 = vmatprep.subr.mxu0 0.0
  %194 = vmatpush1.msra.mxu0 %v28
  %195 = vmatprep.subr.mxu0 0.0
  %196 = vmatpush2.msra.mxu0 %v59
  %197 = vmatprep.subr.mxu0 0.0
  %198 = vmatpush2.msra.mxu0 %v58
  %199 = vmatprep.subr.mxu0 0.0
  %200 = vmatpush2.msra.mxu0 %v57
  %201 = vmatprep.subr.mxu0 0.0
  %202 = vmatpush2.msra.mxu0 %v56
  %203 = vmatprep.subr.mxu0 0.0
  %204 = vmatpush2.msra.mxu0 %v55
  %205 = vmatprep.subr.mxu0 0.0
  %206 = vmatpush2.msra.mxu0 %v54
  %207 = vmatprep.subr.mxu0 0.0
  %208 = vmatpush2.msra.mxu0 %v53
  %209 = vmatprep.subr.mxu0 0.0
  %210 = vmatpush2.msra.mxu0 %v52
  %211 = vmatprep.subr.mxu0 0.0
  %212 = vmatpush2.msra.mxu0 %v51
  %213 = vmatprep.subr.mxu0 0.0
  %214 = vmatpush2.msra.mxu0 %v50
  %215 = vmatprep.subr.mxu0 0.0
  %216 = vmatpush2.msra.mxu0 %v49
  %217 = vmatprep.subr.mxu0 0.0
  %218 = vmatpush2.msra.mxu0 %v48
  %219 = vmatprep.subr.mxu0 0.0
  %220 = vmatpush2.msra.mxu0 %v47
  %221 = vmatprep.subr.mxu0 0.0
  %222 = vmatpush2.msra.mxu0 %v46
  %223 = vmatprep.subr.mxu0 0.0
  %224 = vmatpush2.msra.mxu0 %v45
  %225 = vmatprep.subr.mxu0 0.0
  %226 = vmatpush2.msra.mxu0 %v44
  %227 = vmatprep.mubr.f32.mxu0 %v21
  %228 = vmatmul.mubr.f32.gmra.mxu0 %v20
  %v229 = vpop.f32.mrf.mxu0
  %v230 = vadd.f32 %v161, %v229
  %v231 = vpop.f32.mrf.mxu0
  %232 = vdwg.mxu0
  %233 = vmatprep.subr.mxu0 0.0
  %234 = vmatpush1.msra.mxu0 %v75
  %235 = vmatprep.subr.mxu0 0.0
  %236 = vmatpush1.msra.mxu0 %v74
  %237 = vmatprep.subr.mxu0 0.0
  %238 = vmatpush1.msra.mxu0 %v73
  %239 = vmatprep.subr.mxu0 0.0
  %240 = vmatpush1.msra.mxu0 %v72
  %241 = vmatprep.subr.mxu0 0.0
  %242 = vmatpush1.msra.mxu0 %v71
  %243 = vmatprep.subr.mxu0 0.0
  %244 = vmatpush1.msra.mxu0 %v70
  %245 = vmatprep.subr.mxu0 0.0
  %246 = vmatpush1.msra.mxu0 %v69
  %247 = vmatprep.subr.mxu0 0.0
  %248 = vmatpush1.msra.mxu0 %v68
  %249 = vmatprep.subr.mxu0 0.0
  %250 = vmatpush1.msra.mxu0 %v67
  %251 = vmatprep.subr.mxu0 0.0
  %252 = vmatpush1.msra.mxu0 %v66
  %253 = vmatprep.subr.mxu0 0.0
  %254 = vmatpush1.msra.mxu0 %v65
  %255 = vmatprep.subr.mxu0 0.0
  %256 = vmatpush1.msra.mxu0 %v64
  %257 = vmatprep.subr.mxu0 0.0
  %258 = vmatpush1.msra.mxu0 %v63
  %259 = vmatprep.subr.mxu0 0.0
  %260 = vmatpush1.msra.mxu0 %v62
  %261 = vmatprep.subr.mxu0 0.0
  %262 = vmatpush1.msra.mxu0 %v61
  %263 = vmatprep.subr.mxu0 0.0
  %264 = vmatpush1.msra.mxu0 %v60
  %265 = vmatprep.subr.mxu0 0.0
  %266 = vmatpush2.msra.mxu0 %v91
  %267 = vmatprep.subr.mxu0 0.0
  %268 = vmatpush2.msra.mxu0 %v90
  %269 = vmatprep.subr.mxu0 0.0
  %270 = vmatpush2.msra.mxu0 %v89
  %271 = vmatprep.subr.mxu0 0.0
  %272 = vmatpush2.msra.mxu0 %v88
  %273 = vmatprep.subr.mxu0 0.0
  %274 = vmatpush2.msra.mxu0 %v87
  %275 = vmatprep.subr.mxu0 0.0
  %276 = vmatpush2.msra.mxu0 %v86
  %277 = vmatprep.subr.mxu0 0.0
  %278 = vmatpush2.msra.mxu0 %v85
  %279 = vmatprep.subr.mxu0 0.0
  %280 = vmatpush2.msra.mxu0 %v84
  %281 = vmatprep.subr.mxu0 0.0
  %282 = vmatpush2.msra.mxu0 %v83
  %283 = vmatprep.subr.mxu0 0.0
  %284 = vmatpush2.msra.mxu0 %v82
  %285 = vmatprep.subr.mxu0 0.0
  %286 = vmatpush2.msra.mxu0 %v81
  %287 = vmatprep.subr.mxu0 0.0
  %288 = vmatpush2.msra.mxu0 %v80
  %289 = vmatprep.subr.mxu0 0.0
  %290 = vmatpush2.msra.mxu0 %v79
  %291 = vmatprep.subr.mxu0 0.0
  %292 = vmatpush2.msra.mxu0 %v78
  %293 = vmatprep.subr.mxu0 0.0
  %294 = vmatpush2.msra.mxu0 %v77
  %295 = vmatprep.subr.mxu0 0.0
  %296 = vmatpush2.msra.mxu0 %v76
  %297 = vmatprep.mubr.f32.mxu0 %v23
  %298 = vmatmul.mubr.f32.gmra.mxu0 %v22
  %v299 = vpop.f32.mrf.mxu0
  %v300 = vadd.f32 %v230, %v299
  %v301 = vpop.f32.mrf.mxu0
  %302 = vdwg.mxu0
  %303 = vmatprep.subr.mxu0 0.0
  %304 = vmatpush1.msra.mxu0 %v107
  %305 = vmatprep.subr.mxu0 0.0
  %306 = vmatpush1.msra.mxu0 %v106
  %307 = vmatprep.subr.mxu0 0.0
  %308 = vmatpush1.msra.mxu0 %v105
  %309 = vmatprep.subr.mxu0 0.0
  %310 = vmatpush1.msra.mxu0 %v104
  %311 = vmatprep.subr.mxu0 0.0
  %312 = vmatpush1.msra.mxu0 %v103
  %313 = vmatprep.subr.mxu0 0.0
  %314 = vmatpush1.msra.mxu0 %v102
  %315 = vmatprep.subr.mxu0 0.0
  %316 = vmatpush1.msra.mxu0 %v101
  %317 = vmatprep.subr.mxu0 0.0
  %318 = vmatpush1.msra.mxu0 %v100
  %319 = vmatprep.subr.mxu0 0.0
  %320 = vmatpush1.msra.mxu0 %v99
  %321 = vmatprep.subr.mxu0 0.0
  %322 = vmatpush1.msra.mxu0 %v98
  %323 = vmatprep.subr.mxu0 0.0
  %324 = vmatpush1.msra.mxu0 %v97
  %325 = vmatprep.subr.mxu0 0.0
  %326 = vmatpush1.msra.mxu0 %v96
  %327 = vmatprep.subr.mxu0 0.0
  %328 = vmatpush1.msra.mxu0 %v95
  %329 = vmatprep.subr.mxu0 0.0
  %330 = vmatpush1.msra.mxu0 %v94
  %331 = vmatprep.subr.mxu0 0.0
  %332 = vmatpush1.msra.mxu0 %v93
  %333 = vmatprep.subr.mxu0 0.0
  %334 = vmatpush1.msra.mxu0 %v92
  %335 = vmatprep.subr.mxu0 0.0
  %336 = vmatpush2.msra.mxu0 %v123
  %337 = vmatprep.subr.mxu0 0.0
  %338 = vmatpush2.msra.mxu0 %v122
  %339 = vmatprep.subr.mxu0 0.0
  %340 = vmatpush2.msra.mxu0 %v121
  %341 = vmatprep.subr.mxu0 0.0
  %342 = vmatpush2.msra.mxu0 %v120
  %343 = vmatprep.subr.mxu0 0.0
  %344 = vmatpush2.msra.mxu0 %v119
  %345 = vmatprep.subr.mxu0 0.0
  %346 = vmatpush2.msra.mxu0 %v118
  %347 = vmatprep.subr.mxu0 0.0
  %348 = vmatpush2.msra.mxu0 %v117
  %349 = vmatprep.subr.mxu0 0.0
  %350 = vmatpush2.msra.mxu0 %v116
  %351 = vmatprep.subr.mxu0 0.0
  %352 = vmatpush2.msra.mxu0 %v115
  %353 = vmatprep.subr.mxu0 0.0
  %354 = vmatpush2.msra.mxu0 %v114
  %355 = vmatprep.subr.mxu0 0.0
  %356 = vmatpush2.msra.mxu0 %v113
  %357 = vmatprep.subr.mxu0 0.0
  %358 = vmatpush2.msra.mxu0 %v112
  %359 = vmatprep.subr.mxu0 0.0
  %360 = vmatpush2.msra.mxu0 %v111
  %361 = vmatprep.subr.mxu0 0.0
  %362 = vmatpush2.msra.mxu0 %v110
  %363 = vmatprep.subr.mxu0 0.0
  %364 = vmatpush2.msra.mxu0 %v109
  %365 = vmatprep.subr.mxu0 0.0
  %366 = vmatpush2.msra.mxu0 %v108
  %367 = vmatprep.mubr.f32.mxu0 %v25
  %368 = vmatmul.mubr.f32.gmra.mxu0 %v24
  %v369 = vpop.f32.mrf.mxu0
  %v370 = vadd.f32 %v300, %v369
  %v371 = vpop.f32.mrf.mxu0
  %372 = vdwg.mxu0
  %373 = vmatprep.subr.mxu0 0.0
  %374 = vmatpush1.msra.mxu0 %v139
  %375 = vmatprep.subr.mxu0 0.0
  %376 = vmatpush1.msra.mxu0 %v138
  %377 = vmatprep.subr.mxu0 0.0
  %378 = vmatpush1.msra.mxu0 %v137
  %379 = vmatprep.subr.mxu0 0.0
  %380 = vmatpush1.msra.mxu0 %v136
  %381 = vmatprep.subr.mxu0 0.0
  %382 = vmatpush1.msra.mxu0 %v135
  %383 = vmatprep.subr.mxu0 0.0
  %384 = vmatpush1.msra.mxu0 %v134
  %385 = vmatprep.subr.mxu0 0.0
  %386 = vmatpush1.msra.mxu0 %v133
  %387 = vmatprep.subr.mxu0 0.0
  %388 = vmatpush1.msra.mxu0 %v132
  %389 = vmatprep.subr.mxu0 0.0
  %390 = vmatpush1.msra.mxu0 %v131
  %391 = vmatprep.subr.mxu0 0.0
  %392 = vmatpush1.msra.mxu0 %v130
  %393 = vmatprep.subr.mxu0 0.0
  %394 = vmatpush1.msra.mxu0 %v129
  %395 = vmatprep.subr.mxu0 0.0
  %396 = vmatpush1.msra.mxu0 %v128
  %397 = vmatprep.subr.mxu0 0.0
  %398 = vmatpush1.msra.mxu0 %v127
  %399 = vmatprep.subr.mxu0 0.0
  %400 = vmatpush1.msra.mxu0 %v126
  %401 = vmatprep.subr.mxu0 0.0
  %402 = vmatpush1.msra.mxu0 %v125
  %403 = vmatprep.subr.mxu0 0.0
  %404 = vmatpush1.msra.mxu0 %v124
  %405 = vmatprep.subr.mxu0 0.0
  %406 = vmatpush2.msra.mxu0 %v155
  %407 = vmatprep.subr.mxu0 0.0
  %408 = vmatpush2.msra.mxu0 %v154
  %409 = vmatprep.subr.mxu0 0.0
  %410 = vmatpush2.msra.mxu0 %v153
  %411 = vmatprep.subr.mxu0 0.0
  %412 = vmatpush2.msra.mxu0 %v152
  %413 = vmatprep.subr.mxu0 0.0
  %414 = vmatpush2.msra.mxu0 %v151
  %415 = vmatprep.subr.mxu0 0.0
  %416 = vmatpush2.msra.mxu0 %v150
  %417 = vmatprep.subr.mxu0 0.0
  %418 = vmatpush2.msra.mxu0 %v149
  %419 = vmatprep.subr.mxu0 0.0
  %420 = vmatpush2.msra.mxu0 %v148
  %421 = vmatprep.subr.mxu0 0.0
  %422 = vmatpush2.msra.mxu0 %v147
  %423 = vmatprep.subr.mxu0 0.0
  %424 = vmatpush2.msra.mxu0 %v146
  %425 = vmatprep.subr.mxu0 0.0
  %426 = vmatpush2.msra.mxu0 %v145
  %427 = vmatprep.subr.mxu0 0.0
  %428 = vmatpush2.msra.mxu0 %v144
  %429 = vmatprep.subr.mxu0 0.0
  %430 = vmatpush2.msra.mxu0 %v143
  %431 = vmatprep.subr.mxu0 0.0
  %432 = vmatpush2.msra.mxu0 %v142
  %433 = vmatprep.subr.mxu0 0.0
  %434 = vmatpush2.msra.mxu0 %v141
  %435 = vmatprep.subr.mxu0 0.0
  %436 = vmatpush2.msra.mxu0 %v140
  %437 = vmatprep.mubr.f32.mxu0 %v27
  %438 = vmatmul.mubr.f32.gmra.mxu0 %v26
  %v439 = vpop.f32.mrf.mxu0
  %v440 = vadd.f32 %v370, %v439
  %v441 = vpop.f32.mrf.mxu0
  %442 = vdwg.mxu0
  %v443 = vmax.f32 %v440, 0.0
  %v444 = vld [vmem:[%s3] sm:$0xff]
  %v445 = vld [vmem:[%s3 + $0x8] sm:$0xff]
  %v446 = vld [vmem:[%s3 + $0x10] sm:$0xff]
  %v447 = vld [vmem:[%s3 + $0x18] sm:$0xff]
  %v448 = vld [vmem:[%s3 + $0x20] sm:$0xff]
  %v449 = vld [vmem:[%s3 + $0x28] sm:$0xff]
  %v450 = vld [vmem:[%s3 + $0x30] sm:$0xff]
  %v451 = vld [vmem:[%s3 + $0x38] sm:$0xff]
  %v452 = vld [vmem:[%s3 + $0x40] sm:$0xff]
  %v453 = vld [vmem:[%s3 + $0x48] sm:$0xff]
  %v454 = vld [vmem:[%s3 + $0x50] sm:$0xff]
  %v455 = vld [vmem:[%s3 + $0x58] sm:$0xff]
  %v456 = vld [vmem:[%s3 + $0x60] sm:$0xff]
  %v457 = vld [vmem:[%s3 + $0x68] sm:$0xff]
  %v458 = vld [vmem:[%s3 + $0x70] sm:$0xff]
  %v459 = vld [vmem:[%s3 + $0x78] sm:$0xff]
  %v460 = vld [vmem:[%s4] sm:$0x1]
  %v462 = vlaneseq
  %v463 = vshrl.u32 %v462, 7
  %v464 = vsub.s32 0, %v463
  %v465 = vrot.slane %v460, %v464
  %467 = vmatprep.subr.mxu0 0.0
  %468 = vmatpush1.msra.mxu0 %v459
  %469 = vmatprep.subr.mxu0 0.0
  %470 = vmatpush1.msra.mxu0 %v458
  %471 = vmatprep.subr.mxu0 0.0
  %472 = vmatpush1.msra.mxu0 %v457
  %473 = vmatprep.subr.mxu0 0.0
  %474 = vmatpush1.msra.mxu0 %v456
  %475 = vmatprep.subr.mxu0 0.0
  %476 = vmatpush1.msra.mxu0 %v455
  %477 = vmatprep.subr.mxu0 0.0
  %478 = vmatpush1.msra.mxu0 %v454
  %479 = vmatprep.subr.mxu0 0.0
  %480 = vmatpush1.msra.mxu0 %v453
  %481 = vmatprep.subr.mxu0 0.0
  %482 = vmatpush1.msra.mxu0 %v452
  %483 = vmatprep.subr.mxu0 0.0
  %484 = vmatpush1.msra.mxu0 %v451
  %485 = vmatprep.subr.mxu0 0.0
  %486 = vmatpush1.msra.mxu0 %v450
  %487 = vmatprep.subr.mxu0 0.0
  %488 = vmatpush1.msra.mxu0 %v449
  %489 = vmatprep.subr.mxu0 0.0
  %490 = vmatpush1.msra.mxu0 %v448
  %491 = vmatprep.subr.mxu0 0.0
  %492 = vmatpush1.msra.mxu0 %v447
  %493 = vmatprep.subr.mxu0 0.0
  %494 = vmatpush1.msra.mxu0 %v446
  %495 = vmatprep.subr.mxu0 0.0
  %496 = vmatpush1.msra.mxu0 %v445
  %497 = vmatprep.subr.mxu0 0.0
  %498 = vmatpush1.msra.mxu0 %v444
  %499 = vmatprep.subr.mxu0 0.0
  %500 = vmatpush2.msra.mxu0 0.0
  %501 = vmatprep.subr.mxu0 0.0
  %502 = vmatpush2.msra.mxu0 0.0
  %503 = vmatprep.subr.mxu0 0.0
  %504 = vmatpush2.msra.mxu0 0.0
  %505 = vmatprep.subr.mxu0 0.0
  %506 = vmatpush2.msra.mxu0 0.0
  %507 = vmatprep.subr.mxu0 0.0
  %508 = vmatpush2.msra.mxu0 0.0
  %509 = vmatprep.subr.mxu0 0.0
  %510 = vmatpush2.msra.mxu0 0.0
  %511 = vmatprep.subr.mxu0 0.0
  %512 = vmatpush2.msra.mxu0 0.0
  %513 = vmatprep.subr.mxu0 0.0
  %514 = vmatpush2.msra.mxu0 0.0
  %515 = vmatprep.subr.mxu0 0.0
  %516 = vmatpush2.msra.mxu0 0.0
  %517 = vmatprep.subr.mxu0 0.0
  %518 = vmatpush2.msra.mxu0 0.0
  %519 = vmatprep.subr.mxu0 0.0
  %520 = vmatpush2.msra.mxu0 0.0
  %521 = vmatprep.subr.mxu0 0.0
  %522 = vmatpush2.msra.mxu0 0.0
  %523 = vmatprep.subr.mxu0 0.0
  %524 = vmatpush2.msra.mxu0 0.0
  %525 = vmatprep.subr.mxu0 0.0
  %526 = vmatpush2.msra.mxu0 0.0
  %527 = vmatprep.subr.mxu0 0.0
  %528 = vmatpush2.msra.mxu0 0.0
  %529 = vmatprep.subr.mxu0 0.0
  %530 = vmatpush2.msra.mxu0 0.0
  %531 = vmatprep.mubr.f32.mxu0 0.0
  %532 = vmatmul.mubr.f32.gmra.mxu0 %v443
  %v533 = vpop.f32.mrf.mxu0
  %v534 = vadd.f32 %v465, %v533
  %v535 = vpop.f32.mrf.mxu0
  %536 = vdwg.mxu0
  %v537 = vmax.f32 %v534, 0.0
  %538 = vst [vmem:[%s5] sm:$0xff] %v537
  // Predicated region
  $region22: #{cv_model_forward.1} parent=0 // pred_check
    _
  $region23: #{cv_model_forward.1} parent=0 // pred_check_branch
    %540 = sbr.rel (0) target = $region25
  $region24: #{cv_model_forward.1} parent=0 // pred_region
    _
  $region25: #{cv_model_forward.1} parent=0 // pred_fallthru
    _
  // Predicated region
  $region26: #{cv_model_forward.1} parent=0 // pred_check
    _
  $region27: #{cv_model_forward.1} parent=0 // pred_check_branch
    %542 = sbr.rel (0) target = $region29
  $region28: #{cv_model_forward.1} parent=0 // pred_region
    _
  $region29: #{cv_model_forward.1} parent=0 // pred_fallthru
    _

</llo_original>
